<compile_context>
chip_gen: v5e
topology: v5e:2x2
jax: 0.10.0
libtpu: 0.0.40
codegen_flags: <defaults>
</compile_context>

<pallas_src>
import functools

import jax
import jax.numpy as jnp
from jax.experimental import pallas as pl
from jax.experimental.pallas import tpu as pltpu


def _qcfs_kernel(x_ref, o_ref, *, t, inv_t):
    x = x_ref[...].astype(jnp.float32)
    x = jnp.clip(x, 0.0, 1.0)
    # Multiply by the precomputed reciprocal instead of dividing: stays on
    # the VPU; exact for power-of-two t.
    o_ref[...] = (jnp.floor(x * t + 0.5) * inv_t).astype(o_ref.dtype)


def _pick_lanes(n):
    """Widest lane-dense last dim (multiple of 128) that divides n exactly.

    If one divides n, the (rows, lanes) view is a pure reshape -> no padding
    copy on input and no slicing copy on output.  Otherwise fall back to the
    narrowest lane-dense width (128) to minimize padded waste.
    """
    for lanes in (4096, 2048, 1024, 512, 256, 128):
        if n % lanes == 0:
            return lanes, False
    return 128, True


def qcfs_forward(x, t=8, *, target_block_bytes=4 * 1024 * 1024):
    """Apply the qcfs activation elementwise to an arbitrarily-shaped array."""
    orig_shape = x.shape
    orig_dtype = x.dtype
    n = x.size
    itemsize = jnp.dtype(orig_dtype).itemsize

    lanes, needs_pad = _pick_lanes(n)
    flat = x.reshape(-1)
    if needs_pad:
        n_pad = pl.cdiv(n, lanes) * lanes
        flat = jnp.pad(flat, (0, n_pad - n))  # qcfs(0) == 0, padding is inert
    x2d = flat.reshape(-1, lanes)
    rows = x2d.shape[0]

    # Block sizing: ~4 MiB blocks.  With double buffering that is
    # 2 bufs x (in + out) x 4 MiB = 16 MiB resident, safe even on v7x's
    # 64 MiB VMEM.  Sublane dim is a multiple of 8 (or the full row count for
    # small inputs, which is always legal as a full-extent block); a ragged
    # final block is handled by Pallas masking, so rows need not divide
    # evenly.
    blk_rows = max(8, (target_block_bytes // (lanes * itemsize)) // 8 * 8)
    if rows <= blk_rows:
        blk_rows = rows          # single full-extent block
        grid = (1,)
    else:
        grid = (pl.cdiv(rows, blk_rows),)

    kernel = functools.partial(_qcfs_kernel, t=float(t), inv_t=1.0 / float(t))

    out2d = pl.pallas_call(
        kernel,
        out_shape=jax.ShapeDtypeStruct((rows, lanes), orig_dtype),
        grid=grid,
        in_specs=[pl.BlockSpec((blk_rows, lanes), lambda i: (i, 0))],
        out_specs=pl.BlockSpec((blk_rows, lanes), lambda i: (i, 0)),
        compiler_params=pltpu.CompilerParams(
            dimension_semantics=("parallel",),   # shards the grid across TCs
            vmem_limit_bytes=32 * 1024 * 1024,   # headroom for 16 MiB resident
        ),
        cost_estimate=pl.CostEstimate(
            flops=4 * n,
            transcendentals=0,
            bytes_accessed=2 * n * itemsize,
        ),
    )(x2d)

    out = out2d.reshape(-1)
    if needs_pad:
        out = out[:n]
    return out.reshape(orig_shape)


def qcfs_reference(x, t=8):
    x = jnp.clip(x.astype(jnp.float32), 0.0, 1.0)
    return (jnp.floor(x * float(t) + 0.5) / float(t)).astype(x.dtype)


if __name__ == "__main__":
    key = jax.random.PRNGKey(0)
    t = 8  # qcfs(up=8.0, t=8) — only t affects the forward pass

    # NCHW input consistent with a conv-net activation: batch=2, C=4, H=W=16
    x = jax.random.normal(key, (2, 4, 16, 16), dtype=jnp.float32) * 1.5
    out = jax.block_until_ready(qcfs_forward(x, t=t))
    ref = qcfs_reference(x, t=t)
    assert out.shape == x.shape and out.dtype == x.dtype
    assert jnp.allclose(out, ref, atol=1e-6), "mismatch vs reference"

    # Odd-sized input exercises the lane-padding fallback path.
    x_odd = jax.random.normal(jax.random.PRNGKey(1), (3, 5, 7), dtype=jnp.float32)
    out_odd = jax.block_until_ready(qcfs_forward(x_odd, t=t))
    assert out_odd.shape == x_odd.shape
    assert jnp.allclose(out_odd, qcfs_reference(x_odd, t=t), atol=1e-6)

    print("KERNEL_OK")
</pallas_src>

<mosaic_0001>
module attributes {stable_mosaic.version = 11 : i64} {
  func.func @_qcfs_kernel(%arg0: i32, %arg1: memref<1x2048xf32, #tpu.memory_space<vmem>>, %arg2: memref<1x2048xf32, #tpu.memory_space<vmem>>) attributes {dimension_semantics = [#tpu.dimension_semantics<parallel>], iteration_bounds = array<i64: 1>, scalar_prefetch = 0 : i64, scratch_operands = 0 : i64, tpu.core_type = #tpu.core_type<tc>, window_params = [{transform_indices = @transform_0, window_bounds = array<i64: 1, 2048>}, {transform_indices = @transform_1, window_bounds = array<i64: 1, 2048>}]} {
    %c0 = arith.constant 0 : index
    %c0_0 = arith.constant 0 : index
    %0 = vector.load %arg1[%c0, %c0_0] : memref<1x2048xf32, #tpu.memory_space<vmem>>, vector<1x2048xf32>
    %cst = arith.constant 0.000000e+00 : f32
    %cst_1 = arith.constant 1.000000e+00 : f32
    %1 = vector.broadcast %cst : f32 to vector<1x2048xf32>
    %2 = arith.maximumf %1, %0 : vector<1x2048xf32>
    %3 = vector.broadcast %cst_1 : f32 to vector<1x2048xf32>
    %4 = arith.minimumf %3, %2 : vector<1x2048xf32>
    %cst_2 = arith.constant 8.000000e+00 : f32
    %5 = vector.broadcast %cst_2 : f32 to vector<1x2048xf32>
    %6 = arith.mulf %4, %5 : vector<1x2048xf32>
    %cst_3 = arith.constant 5.000000e-01 : f32
    %7 = vector.broadcast %cst_3 : f32 to vector<1x2048xf32>
    %8 = arith.addf %6, %7 : vector<1x2048xf32>
    %9 = math.floor %8 : vector<1x2048xf32>
    %cst_4 = arith.constant 1.250000e-01 : f32
    %10 = vector.broadcast %cst_4 : f32 to vector<1x2048xf32>
    %11 = arith.mulf %9, %10 : vector<1x2048xf32>
    %c0_5 = arith.constant 0 : index
    %c0_6 = arith.constant 0 : index
    %12 = vector.load %arg2[%c0_5, %c0_6] : memref<1x2048xf32, #tpu.memory_space<vmem>>, vector<1x2048xf32>
    tpu.vector_store %arg2[%c0_5, %c0_6], %11 {strides = array<i32>} : memref<1x2048xf32, #tpu.memory_space<vmem>>, vector<1x2048xf32>,
    return
  }
  func.func @transform_0(%arg0: i32) -> (i32, i32) {
    %c0_i32 = arith.constant 0 : i32
    %c0_i32_0 = arith.constant 0 : i32
    return %arg0, %c0_i32 : i32, i32
  }
  func.func @transform_1(%arg0: i32) -> (i32, i32) {
    %c0_i32 = arith.constant 0 : i32
    %c0_i32_0 = arith.constant 0 : i32
    return %arg0, %c0_i32 : i32, i32
  }
}

</mosaic_0001>

<llo_original>
// kernel: tpu_custom_call.1
$region0: #{tpu_custom_call.1}
  #allocation0 [shape = 'u32[]', space=smem, size = 0x4, offset = 0x4, fixed_abs, tag = 'smem constant byte address 0x4 - core index']
  #allocation1 [shape = 'u32[72,128]{1,0:T(1,128)}', space=vmem, size = 0x9000, scoped, tag = 'internal scratch']
  %s0 = inlined_call_operand.hbm [shape: f32[1,2048], index: 0, kind: input, shape index: {}]
  %s1 = inlined_call_operand.hbm [shape: f32[1,2048], index: 1, kind: output, shape index: {}]
  %s2 = sld [smem:[#allocation0]]
  $region18: #{tpu_custom_call.1} parent=0
    _
  %s4 = ssub.s32 1, %s2
  %s5 = scalar_select 0, %s4, %s2
  $region1: #{tpu_custom_call.1} parent=0
    #allocation2 [shape = 'u8[8192]{0}', space=vmem, size = 0x2000, scoped, tag = 'input window, operand 0, single buffered']
    #allocation3 [shape = 's32[1]{0}', space=sflag, size = 0x4, scoped, tag = 'scoped memory for tpu_custom_call.1']
    #allocation4 [shape = 's32[1]{0}', space=sflag, size = 0x4, scoped, tag = 'scoped memory for tpu_custom_call.1']
    #allocation5 [shape = 'u8[8192]{0}', space=vmem, size = 0x2000, scoped, tag = 'output window, operand 0, single buffered']
    %6 = vsyncpa [#allocation3], 0
    %7 = vsyncpa [#allocation4], 0
    // Predicated region
    $region2: #{tpu_custom_call.1} parent=1 // pred_check
      _
    $region3: #{tpu_custom_call.1} parent=1 // pred_check_branch
      %9 = sbr.rel (0) target = $region5
    $region4: #{tpu_custom_call.1} parent=1 // pred_region
      %11 = vsyncadd [#allocation3], 0
      %s13 = sshll.u32 %s0, 4
      %s14 = int_to_ptr.hbm [resolvable:$true] %s13
      %s15 = sshll.u32 [#allocation2], 4
      %s16 = int_to_ptr.vmem [resolvable:$true] %s15
      %18 = dma.hbm_to_vmem [thread:$0]  %s14, 256, %s16, [#allocation3]
    $region5: #{tpu_custom_call.1} parent=1 // pred_fallthru
      _
    // Predicated region
    $region6: #{tpu_custom_call.1} parent=1 // pred_check
      _
    $region7: #{tpu_custom_call.1} parent=1 // pred_check_branch
      %20 = sbr.rel (0) target = $region9
    $region8: #{tpu_custom_call.1} parent=1 // pred_region
      %22 = dma.done [#allocation3], 256
    $region9: #{tpu_custom_call.1} parent=1 // pred_fallthru
      _
    %v23 = vld [vmem:[#allocation2] sm:$0xff]
    %v24 = vld [vmem:[#allocation2 + $0x8] sm:$0xff]
    %v25 = vmax.f32 %v23, 0.0
    %v26 = vmax.f32 %v24, 0.0
    %v27 = vmin.f32 %v25, 1.0
    %v28 = vmin.f32 %v26, 1.0
    %v29 = vmul.f32 %v27, 8.0
    %v30 = vmul.f32 %v28, 8.0
    %v31 = vadd.f32 %v29, 0.5
    %v32 = vadd.f32 %v30, 0.5
    %v33 = vfloor.f32 %v31
    %v34 = vfloor.f32 %v32
    %v35 = vmul.f32 %v33, 0.125
    %v36 = vmul.f32 %v34, 0.125
    %37 = vst [vmem:[#allocation5] sm:$0xff] %v35
    %38 = vst [vmem:[#allocation5 + $0x8] sm:$0xff] %v36
    // Predicated region
    $region10: #{tpu_custom_call.1} parent=1 // pred_check
      _
    $region11: #{tpu_custom_call.1} parent=1 // pred_check_branch
      %40 = sbr.rel (0) target = $region13
    $region12: #{tpu_custom_call.1} parent=1 // pred_region
      %42 = vsyncadd [#allocation4], 0
      %s44 = sshll.u32 [#allocation5], 4
      %s45 = int_to_ptr.vmem [resolvable:$true] %s44
      %s46 = sshll.u32 %s1, 4
      %s47 = int_to_ptr.hbm [resolvable:$true] %s46
      %49 = dma.vmem_to_hbm [thread:$0]  %s45, 256, %s47, [#allocation4]
    $region13: #{tpu_custom_call.1} parent=1 // pred_fallthru
      _
    // Predicated region
    $region14: #{tpu_custom_call.1} parent=1 // pred_check
      _
    $region15: #{tpu_custom_call.1} parent=1 // pred_check_branch
      %51 = sbr.rel (0) target = $region17
    $region16: #{tpu_custom_call.1} parent=1 // pred_region
      %53 = dma.done [#allocation4], 256
    $region17: #{tpu_custom_call.1} parent=1 // pred_fallthru
      _
    %54 = vsyncpa [#allocation3], 1
    %55 = vsyncpa [#allocation4], 1

</llo_original>
